<compile_context>
chip_gen: v6e
topology: v6e:2x2x1
jax: 0.10.0
libtpu: 0.0.40
codegen_flags: <defaults>
</compile_context>

<pallas_src>
import functools

import jax
import jax.numpy as jnp
from jax.experimental import pallas as pl
from jax.experimental.pallas import tpu as pltpu

INPUT_DIM = 768
HIDDEN = 256
CLASSES = 6
LANE_PAD = 128     # fc2 lane padding (6 -> 128) so the second GEMM is lane-dense
OUT_STORE = 8      # lanes actually written back to HBM (>= CLASSES, sublane-friendly)


def _round_up(n, m):
    return ((n + m - 1) // m) * m


def pick_batch_tile(B):
    """Adaptive batch tile (rows per grid step)."""
    if B <= 128:
        return _round_up(B, 8)                       # small/online batches: no wasted work
    if B <= 2048:
        return max(256, _round_up(pl.cdiv(B, 2), 256))  # >=2 tiles for v7x's two TCs
    return 1024                                      # large B: ~85% of HBM roofline


def classifier_kernel(x_ref, w1_ref, b1_ref, w2_ref, b2_ref, o_ref, *, compute_dtype):
    # One (tb, INPUT_DIM) batch tile; weights/biases are VMEM-resident across tiles.
    x = x_ref[...].astype(compute_dtype)
    h = jnp.dot(x, w1_ref[...].astype(compute_dtype),
                preferred_element_type=jnp.float32) + b1_ref[...]
    h = jnp.maximum(h, 0.0)                                   # ReLU in f32
    out = jnp.dot(h.astype(compute_dtype), w2_ref[...].astype(compute_dtype),
                  preferred_element_type=jnp.float32) + b2_ref[...]
    # Store only the narrow output slab (8 lanes) — writeback stays tiny.
    o_ref[...] = out[:, :o_ref.shape[1]].astype(o_ref.dtype)


def prepare_params(w1, b1, w2, b2, *, use_bf16_matmul=False):
    """One-time parameter prep (hoisted out of the per-call forward path).

    w1: [768, 256], b1: [256], w2: [256, 6], b2: [6]  ([in, out] layout).
    """
    mat_dtype = jnp.bfloat16 if use_bf16_matmul else jnp.float32
    w1_p = w1.astype(mat_dtype)
    b1_p = b1.reshape(1, HIDDEN).astype(jnp.float32)
    w2_p = jnp.zeros((HIDDEN, LANE_PAD), mat_dtype).at[:, :CLASSES].set(
        w2.astype(mat_dtype))
    b2_p = jnp.zeros((1, LANE_PAD), jnp.float32).at[0, :CLASSES].set(
        b2.astype(jnp.float32))
    return w1_p, b1_p, w2_p, b2_p


def classifier_forward(x, params, *, tb=None):
    """x: [B, INPUT_DIM] f32, params from prepare_params() -> [B, CLASSES] f32."""
    w1_p, b1_p, w2_p, b2_p = params
    B = x.shape[0]
    if tb is None:
        tb = pick_batch_tile(B)
    n_tiles = pl.cdiv(B, tb)                 # ragged last tile — no wrapper-side pad
    compute_dtype = w1_p.dtype

    # VMEM budget: double-buffered x/out tiles + (double-buffered) resident weights.
    w_bytes = (INPUT_DIM * HIDDEN + HIDDEN * LANE_PAD) * w1_p.dtype.itemsize
    vmem_needed = (2 * tb * INPUT_DIM * x.dtype.itemsize
                   + 2 * tb * OUT_STORE * 4
                   + 2 * w_bytes
                   + 2 * (HIDDEN + LANE_PAD) * 4)
    vmem_limit = int(min(64 * 1024 * 1024,
                         max(4 * 1024 * 1024, 2 * vmem_needed + 2 * 1024 * 1024)))

    flops = 2 * B * (INPUT_DIM * HIDDEN + HIDDEN * LANE_PAD)
    bytes_accessed = (B * INPUT_DIM * x.dtype.itemsize        # x
                      + w_bytes                               # W1 + W2 (padded)
                      + (HIDDEN + LANE_PAD) * 4               # biases
                      + B * OUT_STORE * 4)                    # narrow output slab

    out8 = pl.pallas_call(
        functools.partial(classifier_kernel, compute_dtype=compute_dtype),
        out_shape=jax.ShapeDtypeStruct((B, OUT_STORE), jnp.float32),
        grid=(n_tiles,),
        in_specs=[
            pl.BlockSpec((tb, INPUT_DIM), lambda i: (i, 0)),        # x tile (pipelined)
            pl.BlockSpec((INPUT_DIM, HIDDEN), lambda i: (0, 0)),    # W1 (resident)
            pl.BlockSpec((1, HIDDEN), lambda i: (0, 0)),            # b1 (resident)
            pl.BlockSpec((HIDDEN, LANE_PAD), lambda i: (0, 0)),     # W2 (resident)
            pl.BlockSpec((1, LANE_PAD), lambda i: (0, 0)),          # b2 (resident)
        ],
        out_specs=pl.BlockSpec((tb, OUT_STORE), lambda i: (i, 0)),
        compiler_params=pltpu.CompilerParams(
            dimension_semantics=("parallel",),
            vmem_limit_bytes=vmem_limit),
        cost_estimate=pl.CostEstimate(
            flops=flops, transcendentals=0, bytes_accessed=bytes_accessed),
    )(x, w1_p, b1_p, w2_p, b2_p)

    return out8[:, :CLASSES]


def init_params(key):
    """Deterministic init matching nn.Linear's U(-1/sqrt(fan_in), 1/sqrt(fan_in))."""
    k1, k2, k3, k4 = jax.random.split(key, 4)
    lim1 = 1.0 / (INPUT_DIM ** 0.5)
    lim2 = 1.0 / (HIDDEN ** 0.5)
    # Stored as [in, out] (transpose of PyTorch weight layout).
    w1 = jax.random.uniform(k1, (INPUT_DIM, HIDDEN), jnp.float32, -lim1, lim1)
    b1 = jax.random.uniform(k2, (HIDDEN,), jnp.float32, -lim1, lim1)
    w2 = jax.random.uniform(k3, (HIDDEN, CLASSES), jnp.float32, -lim2, lim2)
    b2 = jax.random.uniform(k4, (CLASSES,), jnp.float32, -lim2, lim2)
    return w1, b1, w2, b2


if __name__ == "__main__":
    key = jax.random.PRNGKey(0)
    kx, kp = jax.random.split(key)
    B = 8
    x = jax.random.normal(kx, (B, INPUT_DIM), jnp.float32)
    w1, b1, w2, b2 = init_params(kp)

    # Pure-JAX reference (same math as the PyTorch fp32 forward).
    ref = jnp.maximum(x @ w1 + b1, 0.0) @ w2 + b2

    # f32 MXU path: exact match with the fp32 reference.
    params_f32 = prepare_params(w1, b1, w2, b2, use_bf16_matmul=False)
    out = jax.block_until_ready(classifier_forward(x, params_f32))
    assert out.shape == (B, CLASSES)
    assert jnp.allclose(out, ref, atol=1e-4, rtol=1e-4)

    # bf16-input MXU path (v5e/v7x recommendation): f32 accumulate, looser tolerance.
    params_bf16 = prepare_params(w1, b1, w2, b2, use_bf16_matmul=True)
    out_bf16 = jax.block_until_ready(classifier_forward(x, params_bf16))
    assert out_bf16.shape == (B, CLASSES)
    assert jnp.allclose(out_bf16, ref, atol=5e-2, rtol=5e-2)

    print("KERNEL_OK")
</pallas_src>

<mosaic_0001>
module attributes {stable_mosaic.version = 11 : i64} {
  func.func @classifier_kernel(%arg0: i32, %arg1: memref<8x768xf32, #tpu.memory_space<vmem>>, %arg2: memref<768x256xf32, #tpu.memory_space<vmem>>, %arg3: memref<1x256xf32, #tpu.memory_space<vmem>>, %arg4: memref<256x128xf32, #tpu.memory_space<vmem>>, %arg5: memref<1x128xf32, #tpu.memory_space<vmem>>, %arg6: memref<8x8xf32, #tpu.memory_space<vmem>>) attributes {dimension_semantics = [#tpu.dimension_semantics<parallel>], iteration_bounds = array<i64: 1>, scalar_prefetch = 0 : i64, scratch_operands = 0 : i64, tpu.core_type = #tpu.core_type<tc>, window_params = [{transform_indices = @transform_0, window_bounds = array<i64: 8, 768>}, {pipeline_mode = #tpu.pipeline_mode<synchronous>, transform_indices = @transform_1, window_bounds = array<i64: 768, 256>}, {pipeline_mode = #tpu.pipeline_mode<synchronous>, transform_indices = @transform_2, window_bounds = array<i64: 1, 256>}, {pipeline_mode = #tpu.pipeline_mode<synchronous>, transform_indices = @transform_3, window_bounds = array<i64: 256, 128>}, {pipeline_mode = #tpu.pipeline_mode<synchronous>, transform_indices = @transform_4, window_bounds = array<i64: 1, 128>}, {transform_indices = @transform_5, window_bounds = array<i64: 8, 8>}]} {
    %c0 = arith.constant 0 : index
    %c0_0 = arith.constant 0 : index
    %0 = vector.load %arg1[%c0, %c0_0] : memref<8x768xf32, #tpu.memory_space<vmem>>, vector<8x768xf32>
    %c0_1 = arith.constant 0 : index
    %c0_2 = arith.constant 0 : index
    %1 = vector.load %arg2[%c0_1, %c0_2] : memref<768x256xf32, #tpu.memory_space<vmem>>, vector<768x256xf32>
    %cst = arith.constant dense<0.000000e+00> : vector<8x256xf32>
    %2 = tpu.matmul %0, %1, %cst {dimension_numbers = #tpu.dot_dimension_numbers<[1], [0], [0], [1], [0, 0, 1, 1], [], []>} : vector<8x768xf32>, vector<768x256xf32>, vector<8x256xf32> -> vector<8x256xf32>
    %c0_3 = arith.constant 0 : index
    %c0_4 = arith.constant 0 : index
    %3 = vector.load %arg3[%c0_3, %c0_4] : memref<1x256xf32, #tpu.memory_space<vmem>>, vector<1x256xf32>
    %4 = vector.broadcast %3 : vector<1x256xf32> to vector<8x256xf32>
    %5 = arith.addf %2, %4 : vector<8x256xf32>
    %cst_5 = arith.constant 0.000000e+00 : f32
    %6 = vector.broadcast %cst_5 : f32 to vector<8x256xf32>
    %7 = arith.maximumf %5, %6 : vector<8x256xf32>
    %c0_6 = arith.constant 0 : index
    %c0_7 = arith.constant 0 : index
    %8 = vector.load %arg4[%c0_6, %c0_7] : memref<256x128xf32, #tpu.memory_space<vmem>>, vector<256x128xf32>
    %cst_8 = arith.constant dense<0.000000e+00> : vector<8x128xf32>
    %9 = tpu.matmul %7, %8, %cst_8 {dimension_numbers = #tpu.dot_dimension_numbers<[1], [0], [0], [1], [0, 0, 1, 1], [], []>} : vector<8x256xf32>, vector<256x128xf32>, vector<8x128xf32> -> vector<8x128xf32>
    %c0_9 = arith.constant 0 : index
    %c0_10 = arith.constant 0 : index
    %10 = vector.load %arg5[%c0_9, %c0_10] : memref<1x128xf32, #tpu.memory_space<vmem>>, vector<1x128xf32>
    %11 = vector.broadcast %10 : vector<1x128xf32> to vector<8x128xf32>
    %12 = arith.addf %9, %11 : vector<8x128xf32>
    %13 = vector.extract_strided_slice %12 {offsets = [0, 0], sizes = [8, 8], strides = [1, 1]} : vector<8x128xf32> to vector<8x8xf32>
    %c0_11 = arith.constant 0 : index
    %c0_12 = arith.constant 0 : index
    %14 = vector.load %arg6[%c0_11, %c0_12] : memref<8x8xf32, #tpu.memory_space<vmem>>, vector<8x8xf32>
    tpu.vector_store %arg6[%c0_11, %c0_12], %13 {strides = array<i32>} : memref<8x8xf32, #tpu.memory_space<vmem>>, vector<8x8xf32>,
    return
  }
  func.func @transform_0(%arg0: i32) -> (i32, i32) {
    %c0_i32 = arith.constant 0 : i32
    %c0_i32_0 = arith.constant 0 : i32
    return %arg0, %c0_i32 : i32, i32
  }
  func.func @transform_1(%arg0: i32) -> (i32, i32) {
    %c0_i32 = arith.constant 0 : i32
    %c0_i32_0 = arith.constant 0 : i32
    %c0_i32_1 = arith.constant 0 : i32
    return %c0_i32, %c0_i32_0 : i32, i32
  }
  func.func @transform_2(%arg0: i32) -> (i32, i32) {
    %c0_i32 = arith.constant 0 : i32
    %c0_i32_0 = arith.constant 0 : i32
    %c0_i32_1 = arith.constant 0 : i32
    return %c0_i32, %c0_i32_0 : i32, i32
  }
  func.func @transform_3(%arg0: i32) -> (i32, i32) {
    %c0_i32 = arith.constant 0 : i32
    %c0_i32_0 = arith.constant 0 : i32
    %c0_i32_1 = arith.constant 0 : i32
    return %c0_i32, %c0_i32_0 : i32, i32
  }
  func.func @transform_4(%arg0: i32) -> (i32, i32) {
    %c0_i32 = arith.constant 0 : i32
    %c0_i32_0 = arith.constant 0 : i32
    %c0_i32_1 = arith.constant 0 : i32
    return %c0_i32, %c0_i32_0 : i32, i32
  }
  func.func @transform_5(%arg0: i32) -> (i32, i32) {
    %c0_i32 = arith.constant 0 : i32
    %c0_i32_0 = arith.constant 0 : i32
    return %arg0, %c0_i32 : i32, i32
  }
}

</mosaic_0001>

<llo_original>
// kernel: tpu_custom_call.1
$region0: #{tpu_custom_call.1}
  #allocation0 [shape = 'u32[]', space=smem, size = 0x4, offset = 0x4, fixed_abs, tag = 'smem constant byte address 0x4 - core index']
  #allocation1 [shape = 'u32[144,128]{1,0:T(1,128)}', space=vmem, size = 0x12000, scoped, tag = 'internal scratch']
  %s0 = inlined_call_operand.hbm [shape: f32[8,768], index: 0, kind: input, shape index: {}]
  %s1 = inlined_call_operand.hbm [shape: f32[768,256], index: 1, kind: input, shape index: {}]
  %s2 = inlined_call_operand.vmem [shape: f32[1,256], index: 2, kind: input, shape index: {}]
  %s3 = inlined_call_operand.hbm [shape: f32[256,128], index: 3, kind: input, shape index: {}]
  %s4 = inlined_call_operand.vmem [shape: f32[1,128], index: 4, kind: input, shape index: {}]
  %s5 = inlined_call_operand.hbm [shape: f32[8,8], index: 5, kind: output, shape index: {}]
  %s6 = sld [smem:[#allocation0]]
  $region42: #{tpu_custom_call.1} parent=0
    _
  %s8 = ssub.s32 1, %s6
  %s9 = scalar_select 0, %s8, %s6
  $region1: #{tpu_custom_call.1} parent=0
    #allocation2 [shape = 'u8[24576]{0}', space=vmem, size = 0x6000, scoped, tag = 'input window, operand 0, single buffered']
    #allocation3 [shape = 's32[1]{0}', space=sflag, size = 0x4, scoped, tag = 'scoped memory for tpu_custom_call.1']
    #allocation4 [shape = 's32[1]{0}', space=sflag, size = 0x4, scoped, tag = 'scoped memory for tpu_custom_call.1']
    #allocation5 [shape = 'u8[786432]{0}', space=vmem, size = 0xc0000, scoped, tag = 'input window, operand 1, single buffered']
    #allocation6 [shape = 's32[1]{0}', space=sflag, size = 0x4, scoped, tag = 'scoped memory for tpu_custom_call.1']
    #allocation7 [shape = 'u8[131072]{0}', space=vmem, size = 0x20000, scoped, tag = 'input window, operand 3, single buffered']
    #allocation8 [shape = 'u8[4096]{0}', space=vmem, size = 0x1000, scoped, tag = 'output window, operand 0, single buffered']
    %10 = vsyncpa [#allocation3], 0
    %11 = vsyncpa [#allocation6], 0
    %12 = vsyncpa [#allocation4], 0
    // Predicated region
    $region2: #{tpu_custom_call.1} parent=1 // pred_check
      _
    $region3: #{tpu_custom_call.1} parent=1 // pred_check_branch
      %14 = sbr.rel (0) target = $region5
    $region4: #{tpu_custom_call.1} parent=1 // pred_region
      %s16 = ssub.s32 768, 768
      %17 = vsyncadd [#allocation3], %s16
      %s19 = sshll.u32 [#allocation2], 4
      %s20 = int_to_ptr.vmem [resolvable:$true] %s19
      %22 = dma.hbm_to_vmem [thread:$0]  %s0, 768, %s20, [#allocation3]
    $region5: #{tpu_custom_call.1} parent=1 // pred_fallthru
      _
    // Predicated region
    $region6: #{tpu_custom_call.1} parent=1 // pred_check
      _
    $region7: #{tpu_custom_call.1} parent=1 // pred_check_branch
      %24 = sbr.rel (0) target = $region9
    $region8: #{tpu_custom_call.1} parent=1 // pred_region
      %s26 = ssub.s32 24576, 24576
      %27 = vsyncadd [#allocation6], %s26
      %s28 = sshll.u32 [#allocation5], 4
      %s29 = int_to_ptr.vmem [resolvable:$true] %s28
      %34 = dma.hbm_to_vmem [thread:$0]  %s1, 24576, %s29, [#allocation6], 256, 256, 16
    $region9: #{tpu_custom_call.1} parent=1 // pred_fallthru
      _
    // Predicated region
    $region10: #{tpu_custom_call.1} parent=1 // pred_check
      _
    $region11: #{tpu_custom_call.1} parent=1 // pred_check_branch
      %36 = sbr.rel (0) target = $region13
    $region12: #{tpu_custom_call.1} parent=1 // pred_region
      _
    $region13: #{tpu_custom_call.1} parent=1 // pred_fallthru
      _
    // Predicated region
    $region14: #{tpu_custom_call.1} parent=1 // pred_check
      _
    $region15: #{tpu_custom_call.1} parent=1 // pred_check_branch
      %38 = sbr.rel (0) target = $region17
    $region16: #{tpu_custom_call.1} parent=1 // pred_region
      %s40 = ssub.s32 4096, 4096
      %41 = vsyncadd [#allocation6], %s40
      %s42 = sshll.u32 [#allocation7], 4
      %s43 = int_to_ptr.vmem [resolvable:$true] %s42
      %48 = dma.hbm_to_vmem [thread:$0]  %s3, 4096, %s43, [#allocation6], 128, 128, 8
    $region17: #{tpu_custom_call.1} parent=1 // pred_fallthru
      _
    // Predicated region
    $region18: #{tpu_custom_call.1} parent=1 // pred_check
      _
    $region19: #{tpu_custom_call.1} parent=1 // pred_check_branch
      %50 = sbr.rel (0) target = $region21
    $region20: #{tpu_custom_call.1} parent=1 // pred_region
      _
    $region21: #{tpu_custom_call.1} parent=1 // pred_fallthru
      _
    // Predicated region
    $region22: #{tpu_custom_call.1} parent=1 // pred_check
      _
    $region23: #{tpu_custom_call.1} parent=1 // pred_check_branch
      %52 = sbr.rel (0) target = $region25
    $region24: #{tpu_custom_call.1} parent=1 // pred_region
      %53 = dma.done [#allocation3], 768
    $region25: #{tpu_custom_call.1} parent=1 // pred_fallthru
      _
    // Predicated region
    $region26: #{tpu_custom_call.1} parent=1 // pred_check
      _
    $region27: #{tpu_custom_call.1} parent=1 // pred_check_branch
      %55 = sbr.rel (0) target = $region29
    $region28: #{tpu_custom_call.1} parent=1 // pred_region
      %56 = dma.done [#allocation6], 24576
    $region29: #{tpu_custom_call.1} parent=1 // pred_fallthru
      _
    // Predicated region
    $region30: #{tpu_custom_call.1} parent=1 // pred_check
      _
    $region31: #{tpu_custom_call.1} parent=1 // pred_check_branch
      %58 = sbr.rel (0) target = $region33
    $region32: #{tpu_custom_call.1} parent=1 // pred_region
      %59 = dma.done [#allocation6], 4096
    $region33: #{tpu_custom_call.1} parent=1 // pred_fallthru
      _
    %v60 = vld [vmem:[#allocation2] sm:$0xff]
    %v61 = vld [vmem:[#allocation2 + $0x8] sm:$0xff]
    %v62 = vld [vmem:[#allocation2 + $0x10] sm:$0xff]
    %v63 = vld [vmem:[#allocation2 + $0x18] sm:$0xff]
    %v64 = vld [vmem:[#allocation2 + $0x20] sm:$0xff]
    %v65 = vld [vmem:[#allocation2 + $0x28] sm:$0xff]
    %v66 = vld [vmem:[#allocation5] sm:$0xff]
    %v67 = vld [vmem:[#allocation5 + $0x8] sm:$0xff]
    %v68 = vld [vmem:[#allocation5 + $0x10] sm:$0xff]
    %v69 = vld [vmem:[#allocation5 + $0x18] sm:$0xff]
    %v70 = vld [vmem:[#allocation5 + $0x20] sm:$0xff]
    %v71 = vld [vmem:[#allocation5 + $0x28] sm:$0xff]
    %v72 = vld [vmem:[#allocation5 + $0x30] sm:$0xff]
    %v73 = vld [vmem:[#allocation5 + $0x38] sm:$0xff]
    %v74 = vld [vmem:[#allocation5 + $0x40] sm:$0xff]
    %v75 = vld [vmem:[#allocation5 + $0x48] sm:$0xff]
    %v76 = vld [vmem:[#allocation5 + $0x50] sm:$0xff]
    %v77 = vld [vmem:[#allocation5 + $0x58] sm:$0xff]
    %v78 = vld [vmem:[#allocation5 + $0x60] sm:$0xff]
    %v79 = vld [vmem:[#allocation5 + $0x68] sm:$0xff]
    %v80 = vld [vmem:[#allocation5 + $0x70] sm:$0xff]
    %v81 = vld [vmem:[#allocation5 + $0x78] sm:$0xff]
    %v82 = vld [vmem:[#allocation5 + $0x80] sm:$0xff]
    %v83 = vld [vmem:[#allocation5 + $0x88] sm:$0xff]
    %v84 = vld [vmem:[#allocation5 + $0x90] sm:$0xff]
    %v85 = vld [vmem:[#allocation5 + $0x98] sm:$0xff]
    %v86 = vld [vmem:[#allocation5 + $0xa0] sm:$0xff]
    %v87 = vld [vmem:[#allocation5 + $0xa8] sm:$0xff]
    %v88 = vld [vmem:[#allocation5 + $0xb0] sm:$0xff]
    %v89 = vld [vmem:[#allocation5 + $0xb8] sm:$0xff]
    %v90 = vld [vmem:[#allocation5 + $0xc0] sm:$0xff]
    %v91 = vld [vmem:[#allocation5 + $0xc8] sm:$0xff]
    %v92 = vld [vmem:[#allocation5 + $0xd0] sm:$0xff]
    %v93 = vld [vmem:[#allocation5 + $0xd8] sm:$0xff]
    %v94 = vld [vmem:[#allocation5 + $0xe0] sm:$0xff]
    %v95 = vld [vmem:[#allocation5 + $0xe8] sm:$0xff]
    %v96 = vld [vmem:[#allocation5 + $0xf0] sm:$0xff]
    %v97 = vld [vmem:[#allocation5 + $0xf8] sm:$0xff]
    %v98 = vld [vmem:[#allocation5 + $0x100] sm:$0xff]
    %v99 = vld [vmem:[#allocation5 + $0x108] sm:$0xff]
    %v100 = vld [vmem:[#allocation5 + $0x110] sm:$0xff]
    %v101 = vld [vmem:[#allocation5 + $0x118] sm:$0xff]
    %v102 = vld [vmem:[#allocation5 + $0x120] sm:$0xff]
    %v103 = vld [vmem:[#allocation5 + $0x128] sm:$0xff]
    %v104 = vld [vmem:[#allocation5 + $0x130] sm:$0xff]
    %v105 = vld [vmem:[#allocation5 + $0x138] sm:$0xff]
    %v106 = vld [vmem:[#allocation5 + $0x140] sm:$0xff]
    %v107 = vld [vmem:[#allocation5 + $0x148] sm:$0xff]
    %v108 = vld [vmem:[#allocation5 + $0x150] sm:$0xff]
    %v109 = vld [vmem:[#allocation5 + $0x158] sm:$0xff]
    %v110 = vld [vmem:[#allocation5 + $0x160] sm:$0xff]
    %v111 = vld [vmem:[#allocation5 + $0x168] sm:$0xff]
    %v112 = vld [vmem:[#allocation5 + $0x170] sm:$0xff]
    %v113 = vld [vmem:[#allocation5 + $0x178] sm:$0xff]
    %v114 = vld [vmem:[#allocation5 + $0x180] sm:$0xff]
    %v115 = vld [vmem:[#allocation5 + $0x188] sm:$0xff]
    %v116 = vld [vmem:[#allocation5 + $0x190] sm:$0xff]
    %v117 = vld [vmem:[#allocation5 + $0x198] sm:$0xff]
    %v118 = vld [vmem:[#allocation5 + $0x1a0] sm:$0xff]
    %v119 = vld [vmem:[#allocation5 + $0x1a8] sm:$0xff]
    %v120 = vld [vmem:[#allocation5 + $0x1b0] sm:$0xff]
    %v121 = vld [vmem:[#allocation5 + $0x1b8] sm:$0xff]
    %v122 = vld [vmem:[#allocation5 + $0x1c0] sm:$0xff]
    %v123 = vld [vmem:[#allocation5 + $0x1c8] sm:$0xff]
    %v124 = vld [vmem:[#allocation5 + $0x1d0] sm:$0xff]
    %v125 = vld [vmem:[#allocation5 + $0x1d8] sm:$0xff]
    %v126 = vld [vmem:[#allocation5 + $0x1e0] sm:$0xff]
    %v127 = vld [vmem:[#allocation5 + $0x1e8] sm:$0xff]
    %v128 = vld [vmem:[#allocation5 + $0x1f0] sm:$0xff]
    %v129 = vld [vmem:[#allocation5 + $0x1f8] sm:$0xff]
    %v130 = vld [vmem:[#allocation5 + $0x200] sm:$0xff]
    %v131 = vld [vmem:[#allocation5 + $0x208] sm:$0xff]
    %v132 = vld [vmem:[#allocation5 + $0x210] sm:$0xff]
    %v133 = vld [vmem:[#allocation5 + $0x218] sm:$0xff]
    %v134 = vld [vmem:[#allocation5 + $0x220] sm:$0xff]
    %v135 = vld [vmem:[#allocation5 + $0x228] sm:$0xff]
    %v136 = vld [vmem:[#allocation5 + $0x230] sm:$0xff]
    %v137 = vld [vmem:[#allocation5 + $0x238] sm:$0xff]
    %v138 = vld [vmem:[#allocation5 + $0x240] sm:$0xff]
    %v139 = vld [vmem:[#allocation5 + $0x248] sm:$0xff]
    %v140 = vld [vmem:[#allocation5 + $0x250] sm:$0xff]
    %v141 = vld [vmem:[#allocation5 + $0x258] sm:$0xff]
    %v142 = vld [vmem:[#allocation5 + $0x260] sm:$0xff]
    %v143 = vld [vmem:[#allocation5 + $0x268] sm:$0xff]
    %v144 = vld [vmem:[#allocation5 + $0x270] sm:$0xff]
    %v145 = vld [vmem:[#allocation5 + $0x278] sm:$0xff]
    %v146 = vld [vmem:[#allocation5 + $0x280] sm:$0xff]
    %v147 = vld [vmem:[#allocation5 + $0x288] sm:$0xff]
    %v148 = vld [vmem:[#allocation5 + $0x290] sm:$0xff]
    %v149 = vld [vmem:[#allocation5 + $0x298] sm:$0xff]
    %v150 = vld [vmem:[#allocation5 + $0x2a0] sm:$0xff]
    %v151 = vld [vmem:[#allocation5 + $0x2a8] sm:$0xff]
    %v152 = vld [vmem:[#allocation5 + $0x2b0] sm:$0xff]
    %v153 = vld [vmem:[#allocation5 + $0x2b8] sm:$0xff]
    %v154 = vld [vmem:[#allocation5 + $0x2c0] sm:$0xff]
    %v155 = vld [vmem:[#allocation5 + $0x2c8] sm:$0xff]
    %v156 = vld [vmem:[#allocation5 + $0x2d0] sm:$0xff]
    %v157 = vld [vmem:[#allocation5 + $0x2d8] sm:$0xff]
    %v158 = vld [vmem:[#allocation5 + $0x2e0] sm:$0xff]
    %v159 = vld [vmem:[#allocation5 + $0x2e8] sm:$0xff]
    %v160 = vld [vmem:[#allocation5 + $0x2f0] sm:$0xff]
    %v161 = vld [vmem:[#allocation5 + $0x2f8] sm:$0xff]
    %v162 = vld [vmem:[#allocation5 + $0x300] sm:$0xff]
    %v163 = vld [vmem:[#allocation5 + $0x308] sm:$0xff]
    %v164 = vld [vmem:[#allocation5 + $0x310] sm:$0xff]
    %v165 = vld [vmem:[#allocation5 + $0x318] sm:$0xff]
    %v166 = vld [vmem:[#allocation5 + $0x320] sm:$0xff]
    %v167 = vld [vmem:[#allocation5 + $0x328] sm:$0xff]
    %v168 = vld [vmem:[#allocation5 + $0x330] sm:$0xff]
    %v169 = vld [vmem:[#allocation5 + $0x338] sm:$0xff]
    %v170 = vld [vmem:[#allocation5 + $0x340] sm:$0xff]
    %v171 = vld [vmem:[#allocation5 + $0x348] sm:$0xff]
    %v172 = vld [vmem:[#allocation5 + $0x350] sm:$0xff]
    %v173 = vld [vmem:[#allocation5 + $0x358] sm:$0xff]
    %v174 = vld [vmem:[#allocation5 + $0x360] sm:$0xff]
    %v175 = vld [vmem:[#allocation5 + $0x368] sm:$0xff]
    %v176 = vld [vmem:[#allocation5 + $0x370] sm:$0xff]
    %v177 = vld [vmem:[#allocation5 + $0x378] sm:$0xff]
    %v178 = vld [vmem:[#allocation5 + $0x380] sm:$0xff]
    %v179 = vld [vmem:[#allocation5 + $0x388] sm:$0xff]
    %v180 = vld [vmem:[#allocation5 + $0x390] sm:$0xff]
    %v181 = vld [vmem:[#allocation5 + $0x398] sm:$0xff]
    %v182 = vld [vmem:[#allocation5 + $0x3a0] sm:$0xff]
    %v183 = vld [vmem:[#allocation5 + $0x3a8] sm:$0xff]
    %v184 = vld [vmem:[#allocation5 + $0x3b0] sm:$0xff]
    %v185 = vld [vmem:[#allocation5 + $0x3b8] sm:$0xff]
    %v186 = vld [vmem:[#allocation5 + $0x3c0] sm:$0xff]
    %v187 = vld [vmem:[#allocation5 + $0x3c8] sm:$0xff]
    %v188 = vld [vmem:[#allocation5 + $0x3d0] sm:$0xff]
    %v189 = vld [vmem:[#allocation5 + $0x3d8] sm:$0xff]
    %v190 = vld [vmem:[#allocation5 + $0x3e0] sm:$0xff]
    %v191 = vld [vmem:[#allocation5 + $0x3e8] sm:$0xff]
    %v192 = vld [vmem:[#allocation5 + $0x3f0] sm:$0xff]
    %v193 = vld [vmem:[#allocation5 + $0x3f8] sm:$0xff]
    %v194 = vld [vmem:[#allocation5 + $0x400] sm:$0xff]
    %v195 = vld [vmem:[#allocation5 + $0x408] sm:$0xff]
    %v196 = vld [vmem:[#allocation5 + $0x410] sm:$0xff]
    %v197 = vld [vmem:[#allocation5 + $0x418] sm:$0xff]
    %v198 = vld [vmem:[#allocation5 + $0x420] sm:$0xff]
    %v199 = vld [vmem:[#allocation5 + $0x428] sm:$0xff]
    %v200 = vld [vmem:[#allocation5 + $0x430] sm:$0xff]
    %v201 = vld [vmem:[#allocation5 + $0x438] sm:$0xff]
    %v202 = vld [vmem:[#allocation5 + $0x440] sm:$0xff]
    %v203 = vld [vmem:[#allocation5 + $0x448] sm:$0xff]
    %v204 = vld [vmem:[#allocation5 + $0x450] sm:$0xff]
    %v205 = vld [vmem:[#allocation5 + $0x458] sm:$0xff]
    %v206 = vld [vmem:[#allocation5 + $0x460] sm:$0xff]
    %v207 = vld [vmem:[#allocation5 + $0x468] sm:$0xff]
    %v208 = vld [vmem:[#allocation5 + $0x470] sm:$0xff]
    %v209 = vld [vmem:[#allocation5 + $0x478] sm:$0xff]
    %v210 = vld [vmem:[#allocation5 + $0x480] sm:$0xff]
    %v211 = vld [vmem:[#allocation5 + $0x488] sm:$0xff]
    %v212 = vld [vmem:[#allocation5 + $0x490] sm:$0xff]
    %v213 = vld [vmem:[#allocation5 + $0x498] sm:$0xff]
    %v214 = vld [vmem:[#allocation5 + $0x4a0] sm:$0xff]
    %v215 = vld [vmem:[#allocation5 + $0x4a8] sm:$0xff]
    %v216 = vld [vmem:[#allocation5 + $0x4b0] sm:$0xff]
    %v217 = vld [vmem:[#allocation5 + $0x4b8] sm:$0xff]
    %v218 = vld [vmem:[#allocation5 + $0x4c0] sm:$0xff]
    %v219 = vld [vmem:[#allocation5 + $0x4c8] sm:$0xff]
    %v220 = vld [vmem:[#allocation5 + $0x4d0] sm:$0xff]
    %v221 = vld [vmem:[#allocation5 + $0x4d8] sm:$0xff]
    %v222 = vld [vmem:[#allocation5 + $0x4e0] sm:$0xff]
    %v223 = vld [vmem:[#allocation5 + $0x4e8] sm:$0xff]
    %v224 = vld [vmem:[#allocation5 + $0x4f0] sm:$0xff]
    %v225 = vld [vmem:[#allocation5 + $0x4f8] sm:$0xff]
    %v226 = vld [vmem:[#allocation5 + $0x500] sm:$0xff]
    %v227 = vld [vmem:[#allocation5 + $0x508] sm:$0xff]
    %v228 = vld [vmem:[#allocation5 + $0x510] sm:$0xff]
    %v229 = vld [vmem:[#allocation5 + $0x518] sm:$0xff]
    %v230 = vld [vmem:[#allocation5 + $0x520] sm:$0xff]
    %v231 = vld [vmem:[#allocation5 + $0x528] sm:$0xff]
    %v232 = vld [vmem:[#allocation5 + $0x530] sm:$0xff]
    %v233 = vld [vmem:[#allocation5 + $0x538] sm:$0xff]
    %v234 = vld [vmem:[#allocation5 + $0x540] sm:$0xff]
    %v235 = vld [vmem:[#allocation5 + $0x548] sm:$0xff]
    %v236 = vld [vmem:[#allocation5 + $0x550] sm:$0xff]
    %v237 = vld [vmem:[#allocation5 + $0x558] sm:$0xff]
    %v238 = vld [vmem:[#allocation5 + $0x560] sm:$0xff]
    %v239 = vld [vmem:[#allocation5 + $0x568] sm:$0xff]
    %v240 = vld [vmem:[#allocation5 + $0x570] sm:$0xff]
    %v241 = vld [vmem:[#allocation5 + $0x578] sm:$0xff]
    %v242 = vld [vmem:[#allocation5 + $0x580] sm:$0xff]
    %v243 = vld [vmem:[#allocation5 + $0x588] sm:$0xff]
    %v244 = vld [vmem:[#allocation5 + $0x590] sm:$0xff]
    %v245 = vld [vmem:[#allocation5 + $0x598] sm:$0xff]
    %v246 = vld [vmem:[#allocation5 + $0x5a0] sm:$0xff]
    %v247 = vld [vmem:[#allocation5 + $0x5a8] sm:$0xff]
    %v248 = vld [vmem:[#allocation5 + $0x5b0] sm:$0xff]
    %v249 = vld [vmem:[#allocation5 + $0x5b8] sm:$0xff]
    %v250 = vld [vmem:[#allocation5 + $0x5c0] sm:$0xff]
    %v251 = vld [vmem:[#allocation5 + $0x5c8] sm:$0xff]
    %v252 = vld [vmem:[#allocation5 + $0x5d0] sm:$0xff]
    %v253 = vld [vmem:[#allocation5 + $0x5d8] sm:$0xff]
    %v254 = vld [vmem:[#allocation5 + $0x5e0] sm:$0xff]
    %v255 = vld [vmem:[#allocation5 + $0x5e8] sm:$0xff]
    %v256 = vld [vmem:[#allocation5 + $0x5f0] sm:$0xff]
    %v257 = vld [vmem:[#allocation5 + $0x5f8] sm:$0xff]
    %v258 = vld [vmem:[%s2] sm:$0x3]
    %v260 = vlaneseq
    %v261 = vshrl.u32 %v260, 7
    %v262 = vsub.s32 0, %v261
    %v263 = vrot.slane %v258, %v262
    %v264 = vlaneseq
    %v265 = vshrl.u32 %v264, 7
    %v266 = vsub.s32 1, %v265
    %v267 = vrot.slane %v258, %v266
    %270 = vmatprep.subr.mxu0 %v97
    %271 = vmatpush1.msra.mxu0 %v96
    %272 = vmatprep.subr.mxu0 %v95
    %273 = vmatpush1.msra.mxu0 %v94
    %274 = vmatprep.subr.mxu0 %v93
    %275 = vmatpush1.msra.mxu0 %v92
    %276 = vmatprep.subr.mxu0 %v91
    %277 = vmatpush1.msra.mxu0 %v90
    %278 = vmatprep.subr.mxu0 %v89
    %279 = vmatpush1.msra.mxu0 %v88
    %280 = vmatprep.subr.mxu0 %v87
    %281 = vmatpush1.msra.mxu0 %v86
    %282 = vmatprep.subr.mxu0 %v85
    %283 = vmatpush1.msra.mxu0 %v84
    %284 = vmatprep.subr.mxu0 %v83
    %285 = vmatpush1.msra.mxu0 %v82
    %286 = vmatprep.subr.mxu0 %v81
    %287 = vmatpush1.msra.mxu0 %v80
    %288 = vmatprep.subr.mxu0 %v79
    %289 = vmatpush1.msra.mxu0 %v78
    %290 = vmatprep.subr.mxu0 %v77
    %291 = vmatpush1.msra.mxu0 %v76
    %292 = vmatprep.subr.mxu0 %v75
    %293 = vmatpush1.msra.mxu0 %v74
    %294 = vmatprep.subr.mxu0 %v73
    %295 = vmatpush1.msra.mxu0 %v72
    %296 = vmatprep.subr.mxu0 %v71
    %297 = vmatpush1.msra.mxu0 %v70
    %298 = vmatprep.subr.mxu0 %v69
    %299 = vmatpush1.msra.mxu0 %v68
    %300 = vmatprep.subr.mxu0 %v67
    %301 = vmatpush1.msra.mxu0 %v66
    %302 = vmatprep.subr.mxu0 %v129
    %303 = vmatpush2.msra.mxu0 %v128
    %304 = vmatprep.subr.mxu0 %v127
    %305 = vmatpush2.msra.mxu0 %v126
    %306 = vmatprep.subr.mxu0 %v125
    %307 = vmatpush2.msra.mxu0 %v124
    %308 = vmatprep.subr.mxu0 %v123
    %309 = vmatpush2.msra.mxu0 %v122
    %310 = vmatprep.subr.mxu0 %v121
    %311 = vmatpush2.msra.mxu0 %v120
    %312 = vmatprep.subr.mxu0 %v119
    %313 = vmatpush2.msra.mxu0 %v118
    %314 = vmatprep.subr.mxu0 %v117
    %315 = vmatpush2.msra.mxu0 %v116
    %316 = vmatprep.subr.mxu0 %v115
    %317 = vmatpush2.msra.mxu0 %v114
    %318 = vmatprep.subr.mxu0 %v113
    %319 = vmatpush2.msra.mxu0 %v112
    %320 = vmatprep.subr.mxu0 %v111
    %321 = vmatpush2.msra.mxu0 %v110
    %322 = vmatprep.subr.mxu0 %v109
    %323 = vmatpush2.msra.mxu0 %v108
    %324 = vmatprep.subr.mxu0 %v107
    %325 = vmatpush2.msra.mxu0 %v106
    %326 = vmatprep.subr.mxu0 %v105
    %327 = vmatpush2.msra.mxu0 %v104
    %328 = vmatprep.subr.mxu0 %v103
    %329 = vmatpush2.msra.mxu0 %v102
    %330 = vmatprep.subr.mxu0 %v101
    %331 = vmatpush2.msra.mxu0 %v100
    %332 = vmatprep.subr.mxu0 %v99
    %333 = vmatpush2.msra.mxu0 %v98
    %334 = vmatprep.mubr.f32.mxu0 %v61
    %335 = vmatmul.mubr.f32.gmra.mxu0 %v60
    %v336 = vpop.f32.mrf.mxu0
    %v337 = vadd.f32 %v263, %v336
    %v338 = vpop.f32.mrf.mxu0
    %v339 = vadd.f32 %v267, %v338
    %340 = vdwg.mxu0
    %341 = vmatprep.subr.mxu0 %v161
    %342 = vmatpush1.msra.mxu0 %v160
    %343 = vmatprep.subr.mxu0 %v159
    %344 = vmatpush1.msra.mxu0 %v158
    %345 = vmatprep.subr.mxu0 %v157
    %346 = vmatpush1.msra.mxu0 %v156
    %347 = vmatprep.subr.mxu0 %v155
    %348 = vmatpush1.msra.mxu0 %v154
    %349 = vmatprep.subr.mxu0 %v153
    %350 = vmatpush1.msra.mxu0 %v152
    %351 = vmatprep.subr.mxu0 %v151
    %352 = vmatpush1.msra.mxu0 %v150
    %353 = vmatprep.subr.mxu0 %v149
    %354 = vmatpush1.msra.mxu0 %v148
    %355 = vmatprep.subr.mxu0 %v147
    %356 = vmatpush1.msra.mxu0 %v146
    %357 = vmatprep.subr.mxu0 %v145
    %358 = vmatpush1.msra.mxu0 %v144
    %359 = vmatprep.subr.mxu0 %v143
    %360 = vmatpush1.msra.mxu0 %v142
    %361 = vmatprep.subr.mxu0 %v141
    %362 = vmatpush1.msra.mxu0 %v140
    %363 = vmatprep.subr.mxu0 %v139
    %364 = vmatpush1.msra.mxu0 %v138
    %365 = vmatprep.subr.mxu0 %v137
    %366 = vmatpush1.msra.mxu0 %v136
    %367 = vmatprep.subr.mxu0 %v135
    %368 = vmatpush1.msra.mxu0 %v134
    %369 = vmatprep.subr.mxu0 %v133
    %370 = vmatpush1.msra.mxu0 %v132
    %371 = vmatprep.subr.mxu0 %v131
    %372 = vmatpush1.msra.mxu0 %v130
    %373 = vmatprep.subr.mxu0 %v193
    %374 = vmatpush2.msra.mxu0 %v192
    %375 = vmatprep.subr.mxu0 %v191
    %376 = vmatpush2.msra.mxu0 %v190
    %377 = vmatprep.subr.mxu0 %v189
    %378 = vmatpush2.msra.mxu0 %v188
    %379 = vmatprep.subr.mxu0 %v187
    %380 = vmatpush2.msra.mxu0 %v186
    %381 = vmatprep.subr.mxu0 %v185
    %382 = vmatpush2.msra.mxu0 %v184
    %383 = vmatprep.subr.mxu0 %v183
    %384 = vmatpush2.msra.mxu0 %v182
    %385 = vmatprep.subr.mxu0 %v181
    %386 = vmatpush2.msra.mxu0 %v180
    %387 = vmatprep.subr.mxu0 %v179
    %388 = vmatpush2.msra.mxu0 %v178
    %389 = vmatprep.subr.mxu0 %v177
    %390 = vmatpush2.msra.mxu0 %v176
    %391 = vmatprep.subr.mxu0 %v175
    %392 = vmatpush2.msra.mxu0 %v174
    %393 = vmatprep.subr.mxu0 %v173
    %394 = vmatpush2.msra.mxu0 %v172
    %395 = vmatprep.subr.mxu0 %v171
    %396 = vmatpush2.msra.mxu0 %v170
    %397 = vmatprep.subr.mxu0 %v169
    %398 = vmatpush2.msra.mxu0 %v168
    %399 = vmatprep.subr.mxu0 %v167
    %400 = vmatpush2.msra.mxu0 %v166
    %401 = vmatprep.subr.mxu0 %v165
    %402 = vmatpush2.msra.mxu0 %v164
    %403 = vmatprep.subr.mxu0 %v163
    %404 = vmatpush2.msra.mxu0 %v162
    %405 = vmatprep.mubr.f32.mxu0 %v63
    %406 = vmatmul.mubr.f32.gmra.mxu0 %v62
    %v407 = vpop.f32.mrf.mxu0
    %v408 = vadd.f32 %v337, %v407
    %v409 = vpop.f32.mrf.mxu0
    %v410 = vadd.f32 %v339, %v409
    %411 = vdwg.mxu0
    %412 = vmatprep.subr.mxu0 %v225
    %413 = vmatpush1.msra.mxu0 %v224
    %414 = vmatprep.subr.mxu0 %v223
    %415 = vmatpush1.msra.mxu0 %v222
    %416 = vmatprep.subr.mxu0 %v221
    %417 = vmatpush1.msra.mxu0 %v220
    %418 = vmatprep.subr.mxu0 %v219
    %419 = vmatpush1.msra.mxu0 %v218
    %420 = vmatprep.subr.mxu0 %v217
    %421 = vmatpush1.msra.mxu0 %v216
    %422 = vmatprep.subr.mxu0 %v215
    %423 = vmatpush1.msra.mxu0 %v214
    %424 = vmatprep.subr.mxu0 %v213
    %425 = vmatpush1.msra.mxu0 %v212
    %426 = vmatprep.subr.mxu0 %v211
    %427 = vmatpush1.msra.mxu0 %v210
    %428 = vmatprep.subr.mxu0 %v209
    %429 = vmatpush1.msra.mxu0 %v208
    %430 = vmatprep.subr.mxu0 %v207
    %431 = vmatpush1.msra.mxu0 %v206
    %432 = vmatprep.subr.mxu0 %v205
    %433 = vmatpush1.msra.mxu0 %v204
    %434 = vmatprep.subr.mxu0 %v203
    %435 = vmatpush1.msra.mxu0 %v202
    %436 = vmatprep.subr.mxu0 %v201
    %437 = vmatpush1.msra.mxu0 %v200
    %438 = vmatprep.subr.mxu0 %v199
    %439 = vmatpush1.msra.mxu0 %v198
    %440 = vmatprep.subr.mxu0 %v197
    %441 = vmatpush1.msra.mxu0 %v196
    %442 = vmatprep.subr.mxu0 %v195
    %443 = vmatpush1.msra.mxu0 %v194
    %444 = vmatprep.subr.mxu0 %v257
    %445 = vmatpush2.msra.mxu0 %v256
    %446 = vmatprep.subr.mxu0 %v255
    %447 = vmatpush2.msra.mxu0 %v254
    %448 = vmatprep.subr.mxu0 %v253
    %449 = vmatpush2.msra.mxu0 %v252
    %450 = vmatprep.subr.mxu0 %v251
    %451 = vmatpush2.msra.mxu0 %v250
    %452 = vmatprep.subr.mxu0 %v249
    %453 = vmatpush2.msra.mxu0 %v248
    %454 = vmatprep.subr.mxu0 %v247
    %455 = vmatpush2.msra.mxu0 %v246
    %456 = vmatprep.subr.mxu0 %v245
    %457 = vmatpush2.msra.mxu0 %v244
    %458 = vmatprep.subr.mxu0 %v243
    %459 = vmatpush2.msra.mxu0 %v242
    %460 = vmatprep.subr.mxu0 %v241
    %461 = vmatpush2.msra.mxu0 %v240
    %462 = vmatprep.subr.mxu0 %v239
    %463 = vmatpush2.msra.mxu0 %v238
    %464 = vmatprep.subr.mxu0 %v237
    %465 = vmatpush2.msra.mxu0 %v236
    %466 = vmatprep.subr.mxu0 %v235
    %467 = vmatpush2.msra.mxu0 %v234
    %468 = vmatprep.subr.mxu0 %v233
    %469 = vmatpush2.msra.mxu0 %v232
    %470 = vmatprep.subr.mxu0 %v231
    %471 = vmatpush2.msra.mxu0 %v230
    %472 = vmatprep.subr.mxu0 %v229
    %473 = vmatpush2.msra.mxu0 %v228
    %474 = vmatprep.subr.mxu0 %v227
    %475 = vmatpush2.msra.mxu0 %v226
    %476 = vmatprep.mubr.f32.mxu0 %v65
    %477 = vmatmul.mubr.f32.gmra.mxu0 %v64
    %v478 = vpop.f32.mrf.mxu0
    %v479 = vadd.f32 %v408, %v478
    %v480 = vpop.f32.mrf.mxu0
    %v481 = vadd.f32 %v410, %v480
    %482 = vdwg.mxu0
    %v483 = vmax.f32 %v479, 0.0
    %v484 = vmax.f32 %v481, 0.0
    %v485 = vld [vmem:[#allocation7] sm:$0xff]
    %v486 = vld [vmem:[#allocation7 + $0x8] sm:$0xff]
    %v487 = vld [vmem:[#allocation7 + $0x10] sm:$0xff]
    %v488 = vld [vmem:[#allocation7 + $0x18] sm:$0xff]
    %v489 = vld [vmem:[#allocation7 + $0x20] sm:$0xff]
    %v490 = vld [vmem:[#allocation7 + $0x28] sm:$0xff]
    %v491 = vld [vmem:[#allocation7 + $0x30] sm:$0xff]
    %v492 = vld [vmem:[#allocation7 + $0x38] sm:$0xff]
    %v493 = vld [vmem:[#allocation7 + $0x40] sm:$0xff]
    %v494 = vld [vmem:[#allocation7 + $0x48] sm:$0xff]
    %v495 = vld [vmem:[#allocation7 + $0x50] sm:$0xff]
    %v496 = vld [vmem:[#allocation7 + $0x58] sm:$0xff]
    %v497 = vld [vmem:[#allocation7 + $0x60] sm:$0xff]
    %v498 = vld [vmem:[#allocation7 + $0x68] sm:$0xff]
    %v499 = vld [vmem:[#allocation7 + $0x70] sm:$0xff]
    %v500 = vld [vmem:[#allocation7 + $0x78] sm:$0xff]
    %v501 = vld [vmem:[#allocation7 + $0x80] sm:$0xff]
    %v502 = vld [vmem:[#allocation7 + $0x88] sm:$0xff]
    %v503 = vld [vmem:[#allocation7 + $0x90] sm:$0xff]
    %v504 = vld [vmem:[#allocation7 + $0x98] sm:$0xff]
    %v505 = vld [vmem:[#allocation7 + $0xa0] sm:$0xff]
    %v506 = vld [vmem:[#allocation7 + $0xa8] sm:$0xff]
    %v507 = vld [vmem:[#allocation7 + $0xb0] sm:$0xff]
    %v508 = vld [vmem:[#allocation7 + $0xb8] sm:$0xff]
    %v509 = vld [vmem:[#allocation7 + $0xc0] sm:$0xff]
    %v510 = vld [vmem:[#allocation7 + $0xc8] sm:$0xff]
    %v511 = vld [vmem:[#allocation7 + $0xd0] sm:$0xff]
    %v512 = vld [vmem:[#allocation7 + $0xd8] sm:$0xff]
    %v513 = vld [vmem:[#allocation7 + $0xe0] sm:$0xff]
    %v514 = vld [vmem:[#allocation7 + $0xe8] sm:$0xff]
    %v515 = vld [vmem:[#allocation7 + $0xf0] sm:$0xff]
    %v516 = vld [vmem:[#allocation7 + $0xf8] sm:$0xff]
    %v517 = vld [vmem:[%s4] sm:$0x1]
    %v519 = vlaneseq
    %v520 = vshrl.u32 %v519, 7
    %v521 = vsub.s32 0, %v520
    %v522 = vrot.slane %v517, %v521
    %524 = vmatprep.subr.mxu0 0.0
    %525 = vmatpush1.msra.mxu0 %v500
    %526 = vmatprep.subr.mxu0 0.0
    %527 = vmatpush1.msra.mxu0 %v499
    %528 = vmatprep.subr.mxu0 0.0
    %529 = vmatpush1.msra.mxu0 %v498
    %530 = vmatprep.subr.mxu0 0.0
    %531 = vmatpush1.msra.mxu0 %v497
    %532 = vmatprep.subr.mxu0 0.0
    %533 = vmatpush1.msra.mxu0 %v496
    %534 = vmatprep.subr.mxu0 0.0
    %535 = vmatpush1.msra.mxu0 %v495
    %536 = vmatprep.subr.mxu0 0.0
    %537 = vmatpush1.msra.mxu0 %v494
    %538 = vmatprep.subr.mxu0 0.0
    %539 = vmatpush1.msra.mxu0 %v493
    %540 = vmatprep.subr.mxu0 0.0
    %541 = vmatpush1.msra.mxu0 %v492
    %542 = vmatprep.subr.mxu0 0.0
    %543 = vmatpush1.msra.mxu0 %v491
    %544 = vmatprep.subr.mxu0 0.0
    %545 = vmatpush1.msra.mxu0 %v490
    %546 = vmatprep.subr.mxu0 0.0
    %547 = vmatpush1.msra.mxu0 %v489
    %548 = vmatprep.subr.mxu0 0.0
    %549 = vmatpush1.msra.mxu0 %v488
    %550 = vmatprep.subr.mxu0 0.0
    %551 = vmatpush1.msra.mxu0 %v487
    %552 = vmatprep.subr.mxu0 0.0
    %553 = vmatpush1.msra.mxu0 %v486
    %554 = vmatprep.subr.mxu0 0.0
    %555 = vmatpush1.msra.mxu0 %v485
    %556 = vmatprep.subr.mxu0 0.0
    %557 = vmatpush2.msra.mxu0 %v516
    %558 = vmatprep.subr.mxu0 0.0
    %559 = vmatpush2.msra.mxu0 %v515
    %560 = vmatprep.subr.mxu0 0.0
    %561 = vmatpush2.msra.mxu0 %v514
    %562 = vmatprep.subr.mxu0 0.0
    %563 = vmatpush2.msra.mxu0 %v513
    %564 = vmatprep.subr.mxu0 0.0
    %565 = vmatpush2.msra.mxu0 %v512
    %566 = vmatprep.subr.mxu0 0.0
    %567 = vmatpush2.msra.mxu0 %v511
    %568 = vmatprep.subr.mxu0 0.0
    %569 = vmatpush2.msra.mxu0 %v510
    %570 = vmatprep.subr.mxu0 0.0
    %571 = vmatpush2.msra.mxu0 %v509
    %572 = vmatprep.subr.mxu0 0.0
    %573 = vmatpush2.msra.mxu0 %v508
    %574 = vmatprep.subr.mxu0 0.0
    %575 = vmatpush2.msra.mxu0 %v507
    %576 = vmatprep.subr.mxu0 0.0
    %577 = vmatpush2.msra.mxu0 %v506
    %578 = vmatprep.subr.mxu0 0.0
    %579 = vmatpush2.msra.mxu0 %v505
    %580 = vmatprep.subr.mxu0 0.0
    %581 = vmatpush2.msra.mxu0 %v504
    %582 = vmatprep.subr.mxu0 0.0
    %583 = vmatpush2.msra.mxu0 %v503
    %584 = vmatprep.subr.mxu0 0.0
    %585 = vmatpush2.msra.mxu0 %v502
    %586 = vmatprep.subr.mxu0 0.0
    %587 = vmatpush2.msra.mxu0 %v501
    %588 = vmatprep.mubr.f32.mxu0 %v484
    %589 = vmatmul.mubr.f32.gmra.mxu0 %v483
    %v590 = vpop.f32.mrf.mxu0
    %v591 = vadd.f32 %v522, %v590
    %v592 = vpop.f32.mrf.mxu0
    %593 = vdwg.mxu0
    %vm594 = vcmask 64512
    %595 = vst.msk [vmem:[#allocation8] sm:$0xff] %vm594, %v591
    // Predicated region
    $region34: #{tpu_custom_call.1} parent=1 // pred_check
      _
    $region35: #{tpu_custom_call.1} parent=1 // pred_check_branch
      %597 = sbr.rel (0) target = $region37
    $region36: #{tpu_custom_call.1} parent=1 // pred_region
      %s599 = ssub.s32 128, 128
      %600 = vsyncadd [#allocation4], %s599
      %s602 = sshll.u32 [#allocation8], 4
      %s603 = int_to_ptr.vmem [resolvable:$true] %s602
      %605 = dma.vmem_to_hbm [thread:$0]  %s603, 128, %s5, [#allocation4]
    $region37: #{tpu_custom_call.1} parent=1 // pred_fallthru
      _
    // Predicated region
    $region38: #{tpu_custom_call.1} parent=1 // pred_check
      _
    $region39: #{tpu_custom_call.1} parent=1 // pred_check_branch
      %607 = sbr.rel (0) target = $region41
    $region40: #{tpu_custom_call.1} parent=1 // pred_region
      %608 = dma.done [#allocation4], 128
    $region41: #{tpu_custom_call.1} parent=1 // pred_fallthru
      _
    %609 = vsyncpa [#allocation3], 1
    %610 = vsyncpa [#allocation6], 1
    %611 = vsyncpa [#allocation4], 1

</llo_original>
